<compile_context>
chip_gen: v6e
topology: v6e:2x2x1
jax: 0.10.0
libtpu: 0.0.40
codegen_flags: <defaults>
</compile_context>

<pallas_src>
import jax
import jax.numpy as jnp
from jax.experimental import pallas as pl
from jax.experimental.pallas import tpu as pltpu

NUM_CLASSES = 3          # class-max below is generic over this
P = 5 + NUM_CLASSES      # raw prediction rows: (cx, cy, w, h, obj, cls0..)
OUT_W = 6                # output rows: (x1, y1, x2, y2, obj*cls_conf, keep)


def _postmodel_kernel(conf_ref, feat_ref, w_ref, b_ref, out_ref):
    # conf_ref: (1,)             f32 SMEM  confidence threshold
    # feat_ref: (1, Cin, A_blk)  f32 VMEM  NCHW features (batch 0), anchors on lanes
    # w_ref:    (P, Cin)         f32 VMEM  1x1-conv weight (PyTorch layout)
    # b_ref:    (P, 1)           f32 VMEM  1x1-conv bias
    # out_ref:  (OUT_W, A_blk)   f32 VMEM  lane-dense per-anchor results
    conf_thre = conf_ref[0]

    # Synthetic detection head (stand-in for the opaque self.model): a 1x1
    # conv over NCHW is exactly W(P, Cin) @ feat(Cin, A) -> lane-dense (P, A).
    # Cast to the MXU dtype here, on the VMEM tile (rides under the DMA).
    feat = feat_ref[0].astype(jnp.bfloat16)
    w = w_ref[...].astype(jnp.bfloat16)
    raw = jnp.dot(w, feat, preferred_element_type=jnp.float32) + b_ref[...]

    # Grouped (multi-sublane) activation / decode, all f32.
    xy = raw[0:2, :]                          # (2, A)  cx, cy
    wh_half = 0.5 * jnp.exp(raw[2:4, :])      # (2, A)  w/2, h/2
    sig = jax.nn.sigmoid(raw[4:, :])          # (1+C, A) obj, cls0..clsC-1

    obj = sig[0:1, :]
    cls_conf = jnp.max(sig[1:, :], axis=0, keepdims=True)   # XLU sublane reduce
    score = obj * cls_conf                                   # pred[:,4]*pred[:,5]
    keep = (score >= conf_thre).astype(jnp.float32)          # conf_mask

    # Direct sublane-slice stores into the lane-dense output tile.
    out_ref[0:2, :] = xy - wh_half            # x1, y1
    out_ref[2:4, :] = xy + wh_half            # x2, y2
    out_ref[4:5, :] = score
    out_ref[5:6, :] = keep


def _pick_lane_block(A, max_blk):
    """Largest multiple-of-128 block <= max_blk that evenly divides A."""
    if A % 128 != 0:
        return A                         # single full-extent block (allowed)
    blk = min(max(max_blk - max_blk % 128, 128), A)
    while A % blk != 0:
        blk -= 128
    return blk


def postmodel_forward(x_nchw, head_w, head_b, *, conf_thre=0.1,
                      max_lane_block=1024):
    """PostModel.forward for image 0 (postprocess(...)[0] discards the rest).

    x_nchw: [B, Cin, H, W]; head_w: [P, Cin] (1x1 conv weight); head_b: [P].
    Returns:
      pred5: (5, A) lane-dense rows (x1, y1, x2, y2, obj*cls_conf)
      keep:  (A,)   bool confidence mask (score >= conf_thre)
    """
    B, Cin, H, W = x_nchw.shape
    A = H * W
    assert head_w.shape == (P, Cin)

    # Free reshape (contiguous trailing dims) in the features' NATIVE dtype:
    # no extra HBM cast/slice pass.  Only batch 0 is DMA'd via the BlockSpec.
    feats = x_nchw.reshape(B, Cin, A)
    w = jnp.asarray(head_w, jnp.float32)
    bias = jnp.asarray(head_b, jnp.float32).reshape(P, 1)
    conf = jnp.full((1,), conf_thre, dtype=jnp.float32)   # SMEM scalar: no recompile

    A_blk = _pick_lane_block(A, max_lane_block)
    grid = (A // A_blk,)

    dense = pl.pallas_call(
        _postmodel_kernel,
        out_shape=jax.ShapeDtypeStruct((OUT_W, A), jnp.float32),
        grid=grid,
        in_specs=[
            pl.BlockSpec(memory_space=pltpu.MemorySpace.SMEM),    # conf_thre
            pl.BlockSpec((1, Cin, A_blk), lambda i: (0, 0, i)),   # feats, batch 0
            pl.BlockSpec((P, Cin), lambda i: (0, 0)),             # weight
            pl.BlockSpec((P, 1), lambda i: (0, 0)),               # bias
        ],
        out_specs=pl.BlockSpec((OUT_W, A_blk), lambda i: (0, i)),
        compiler_params=pltpu.CompilerParams(
            dimension_semantics=("parallel",)),
    )(conf, feats, w, bias)

    # TODO(synk): torchvision batched_nms and boolean-mask compaction
    # (data-dependent output length / returning None) have no clean Pallas
    # equivalent; we return the dense lane-major (5, A) predictions plus the
    # keep mask, to be consumed lane-dense by downstream NMS (no transpose).
    pred5 = dense[:5, :]
    keep = dense[5, :] > 0.5
    return pred5, keep


if __name__ == "__main__":
    key = jax.random.PRNGKey(0)
    k1, k2, k3 = jax.random.split(key, 3)

    B, Cin, H, W = 2, 4, 16, 16
    A = H * W
    x = jax.random.normal(k1, (B, Cin, H, W), dtype=jnp.float32)

    # Deterministic synthetic 1x1-conv head params (PyTorch layout [P, Cin, 1, 1]
    # collapsed to [P, Cin]).
    head_w = 0.5 * jax.random.normal(k2, (P, Cin), dtype=jnp.float32)
    head_b = 0.1 * jax.random.normal(k3, (P,), dtype=jnp.float32)

    conf_thre = 0.1
    # max_lane_block=128 -> grid=(2,) so the demo exercises the tiled path.
    pred5, keep = postmodel_forward(x, head_w, head_b,
                                    conf_thre=conf_thre, max_lane_block=128)
    jax.block_until_ready((pred5, keep))

    assert pred5.shape == (5, A)
    assert keep.shape == (A,)
    # sanity: x2 >= x1 and y2 >= y1 (w, h > 0 by construction)
    assert bool(jnp.all(pred5[2] >= pred5[0]))
    assert bool(jnp.all(pred5[3] >= pred5[1]))

    # Pure-JAX reference (image 0 only; same bf16 rounding of MXU inputs,
    # f32 accumulation and f32 post-matmul math — matches the kernel).
    feat0 = x[0].reshape(Cin, A).astype(jnp.bfloat16).astype(jnp.float32)
    w32 = head_w.astype(jnp.bfloat16).astype(jnp.float32)
    raw = w32 @ feat0 + head_b[:, None]
    wh_half = 0.5 * jnp.exp(raw[2:4])
    obj = jax.nn.sigmoid(raw[4])
    cls_conf = jnp.max(jax.nn.sigmoid(raw[5:5 + NUM_CLASSES]), axis=0)
    score = obj * cls_conf
    ref5 = jnp.concatenate(
        [raw[0:2] - wh_half, raw[0:2] + wh_half, score[None, :]], axis=0)
    assert bool(jnp.allclose(pred5, ref5, rtol=1e-2, atol=1e-2))

    # Keep mask: only check anchors comfortably away from the threshold.
    clear = jnp.abs(score - conf_thre) > 1e-3
    assert bool(jnp.all(jnp.where(clear, keep == (score >= conf_thre), True)))

    print("KERNEL_OK")
</pallas_src>

<mosaic_0001>
module attributes {stable_mosaic.version = 11 : i64} {
  func.func @_postmodel_kernel(%arg0: i32, %arg1: memref<1xf32, #tpu.memory_space<smem>>, %arg2: memref<1x4x128xf32, #tpu.memory_space<vmem>>, %arg3: memref<8x4xf32, #tpu.memory_space<vmem>>, %arg4: memref<8x1xf32, #tpu.memory_space<vmem>>, %arg5: memref<6x128xf32, #tpu.memory_space<vmem>>) attributes {dimension_semantics = [#tpu.dimension_semantics<parallel>], iteration_bounds = array<i64: 2>, scalar_prefetch = 0 : i64, scratch_operands = 0 : i64, tpu.core_type = #tpu.core_type<tc>, window_params = [{transform_indices = @transform_0, window_bounds = array<i64: 1>}, {transform_indices = @transform_1, window_bounds = array<i64: 1, 4, 128>}, {pipeline_mode = #tpu.pipeline_mode<synchronous>, transform_indices = @transform_2, window_bounds = array<i64: 8, 4>}, {pipeline_mode = #tpu.pipeline_mode<synchronous>, transform_indices = @transform_3, window_bounds = array<i64: 8, 1>}, {transform_indices = @transform_4, window_bounds = array<i64: 6, 128>}]} {
    %c0 = arith.constant 0 : index
    %0 = memref.load %arg1[%c0] : memref<1xf32, #tpu.memory_space<smem>>
    %c0_0 = arith.constant 0 : index
    %c0_1 = arith.constant 0 : index
    %c0_2 = arith.constant 0 : index
    %1 = vector.load %arg2[%c0_0, %c0_1, %c0_2] : memref<1x4x128xf32, #tpu.memory_space<vmem>>, vector<1x4x128xf32>
    %2 = vector.shape_cast %1 : vector<1x4x128xf32> to vector<4x128xf32>
    %3 = arith.truncf %2 : vector<4x128xf32> to vector<4x128xbf16>
    %c0_3 = arith.constant 0 : index
    %c0_4 = arith.constant 0 : index
    %4 = vector.load %arg3[%c0_3, %c0_4] : memref<8x4xf32, #tpu.memory_space<vmem>>, vector<8x4xf32>
    %5 = arith.truncf %4 : vector<8x4xf32> to vector<8x4xbf16>
    %cst = arith.constant dense<0.000000e+00> : vector<8x128xf32>
    %6 = tpu.matmul %5, %3, %cst {dimension_numbers = #tpu.dot_dimension_numbers<[1], [0], [0], [1], [0, 0, 1, 1], [], []>} : vector<8x4xbf16>, vector<4x128xbf16>, vector<8x128xf32> -> vector<8x128xf32>
    %c0_5 = arith.constant 0 : index
    %c0_6 = arith.constant 0 : index
    %7 = vector.load %arg4[%c0_5, %c0_6] : memref<8x1xf32, #tpu.memory_space<vmem>>, vector<8x1xf32>
    %8 = vector.broadcast %7 : vector<8x1xf32> to vector<8x128xf32>
    %9 = arith.addf %6, %8 : vector<8x128xf32>
    %10 = vector.extract_strided_slice %9 {offsets = [0, 0], sizes = [2, 128], strides = [1, 1]} : vector<8x128xf32> to vector<2x128xf32>
    %11 = vector.extract_strided_slice %9 {offsets = [2, 0], sizes = [2, 128], strides = [1, 1]} : vector<8x128xf32> to vector<2x128xf32>
    %12 = math.exp %11 : vector<2x128xf32>
    %cst_7 = arith.constant 5.000000e-01 : f32
    %13 = vector.broadcast %cst_7 : f32 to vector<2x128xf32>
    %14 = arith.mulf %13, %12 : vector<2x128xf32>
    %15 = vector.extract_strided_slice %9 {offsets = [4, 0], sizes = [4, 128], strides = [1, 1]} : vector<8x128xf32> to vector<4x128xf32>
    %16 = arith.negf %15 : vector<4x128xf32>
    %17 = math.exp %16 : vector<4x128xf32>
    %cst_8 = arith.constant 1.000000e+00 : f32
    %18 = vector.broadcast %cst_8 : f32 to vector<4x128xf32>
    %19 = arith.addf %18, %17 : vector<4x128xf32>
    %20 = arith.divf %18, %19 : vector<4x128xf32>
    %21 = vector.extract_strided_slice %20 {offsets = [0, 0], sizes = [1, 128], strides = [1, 1]} : vector<4x128xf32> to vector<1x128xf32>
    %22 = vector.extract_strided_slice %20 {offsets = [1, 0], sizes = [3, 128], strides = [1, 1]} : vector<4x128xf32> to vector<3x128xf32>
    %cst_9 = arith.constant dense<0xFF800000> : vector<128xf32>
    %23 = vector.multi_reduction <maximumf>, %22, %cst_9 [0] : vector<3x128xf32> to vector<128xf32>
    %24 = vector.shape_cast %23 : vector<128xf32> to vector<1x128xf32>
    %25 = arith.mulf %21, %24 : vector<1x128xf32>
    %26 = vector.broadcast %0 : f32 to vector<1x128xf32>
    %27 = arith.cmpf oge, %25, %26 : vector<1x128xf32>
    %28 = arith.extui %27 : vector<1x128xi1> to vector<1x128xi32>
    %29 = arith.sitofp %28 : vector<1x128xi32> to vector<1x128xf32>
    %30 = arith.subf %10, %14 : vector<2x128xf32>
    %c0_10 = arith.constant 0 : index
    %c0_11 = arith.constant 0 : index
    %31 = vector.load %arg5[%c0_10, %c0_11] : memref<6x128xf32, #tpu.memory_space<vmem>>, vector<2x128xf32>
    tpu.vector_store %arg5[%c0_10, %c0_11], %30 {strides = array<i32>} : memref<6x128xf32, #tpu.memory_space<vmem>>, vector<2x128xf32>,
    %32 = arith.addf %10, %14 : vector<2x128xf32>
    %c2 = arith.constant 2 : index
    %c0_12 = arith.constant 0 : index
    %33 = vector.load %arg5[%c2, %c0_12] : memref<6x128xf32, #tpu.memory_space<vmem>>, vector<2x128xf32>
    tpu.vector_store %arg5[%c2, %c0_12], %32 {strides = array<i32>} : memref<6x128xf32, #tpu.memory_space<vmem>>, vector<2x128xf32>,
    %c4 = arith.constant 4 : index
    %c0_13 = arith.constant 0 : index
    %34 = vector.load %arg5[%c4, %c0_13] : memref<6x128xf32, #tpu.memory_space<vmem>>, vector<1x128xf32>
    tpu.vector_store %arg5[%c4, %c0_13], %25 {strides = array<i32>} : memref<6x128xf32, #tpu.memory_space<vmem>>, vector<1x128xf32>,
    %c5 = arith.constant 5 : index
    %c0_14 = arith.constant 0 : index
    %35 = vector.load %arg5[%c5, %c0_14] : memref<6x128xf32, #tpu.memory_space<vmem>>, vector<1x128xf32>
    tpu.vector_store %arg5[%c5, %c0_14], %29 {strides = array<i32>} : memref<6x128xf32, #tpu.memory_space<vmem>>, vector<1x128xf32>,
    return
  }
  func.func @transform_0(%arg0: i32) -> i32 {
    %c0_i32 = arith.constant 0 : i32
    %c0_i32_0 = arith.constant 0 : i32
    return %c0_i32 : i32
  }
  func.func @transform_1(%arg0: i32) -> (i32, i32, i32) {
    %c0_i32 = arith.constant 0 : i32
    %c0_i32_0 = arith.constant 0 : i32
    %c0_i32_1 = arith.constant 0 : i32
    return %c0_i32, %c0_i32_0, %arg0 : i32, i32, i32
  }
  func.func @transform_2(%arg0: i32) -> (i32, i32) {
    %c0_i32 = arith.constant 0 : i32
    %c0_i32_0 = arith.constant 0 : i32
    %c0_i32_1 = arith.constant 0 : i32
    return %c0_i32, %c0_i32_0 : i32, i32
  }
  func.func @transform_3(%arg0: i32) -> (i32, i32) {
    %c0_i32 = arith.constant 0 : i32
    %c0_i32_0 = arith.constant 0 : i32
    %c0_i32_1 = arith.constant 0 : i32
    return %c0_i32, %c0_i32_0 : i32, i32
  }
  func.func @transform_4(%arg0: i32) -> (i32, i32) {
    %c0_i32 = arith.constant 0 : i32
    %c0_i32_0 = arith.constant 0 : i32
    return %c0_i32, %arg0 : i32, i32
  }
}

</mosaic_0001>

<llo_original>
// kernel: tpu_custom_call.1
$region0: #{tpu_custom_call.1}
  #allocation0 [shape = 'u32[]', space=smem, size = 0x4, offset = 0x4, fixed_abs, tag = 'smem constant byte address 0x4 - core index']
  #allocation1 [shape = 'u32[144,128]{1,0:T(1,128)}', space=vmem, size = 0x12000, scoped, tag = 'internal scratch']
  #allocation2 [shape = 'f32[1]{0:T(128)S(6)}', space=smem, size = 0x200, scoped, tag = 'scoped memory for tpu_custom_call.1']
  %s0 = inlined_call_operand.<no memory space> [shape: f32[1], index: 0, kind: input, shape index: {}]
  %s1 = inlined_call_operand.vmem [shape: f32[2,4,256], index: 1, kind: input, shape index: {}]
  %s2 = inlined_call_operand.vmem [shape: f32[8,4], index: 2, kind: input, shape index: {}]
  %s3 = inlined_call_operand.vmem [shape: f32[8,1], index: 3, kind: input, shape index: {}]
  %s4 = inlined_call_operand.hbm [shape: f32[6,256], index: 4, kind: output, shape index: {}]
  %s5 = sld [smem:[#allocation0]]
  $region49: #{tpu_custom_call.1} parent=0
    _
  %s7 = ssub.s32 1, %s5
  %s8 = scalar_select 0, %s7, %s5
  %9 = sst [smem:[#allocation2]] %s0
  $region1: #{tpu_custom_call.1} parent=0
    #allocation3 [shape = 'u8[8192]{0}', space=vmem, size = 0x2000, scoped, tag = 'output window, operand 0']
    #allocation4 [shape = 's32[2]{0}', space=sflag, size = 0x8, scoped, tag = 'scoped memory for tpu_custom_call.1']
    %10 = vsyncpa [#allocation4], 0
    %s11 = scalar_lea.sflag [#allocation4], 1
    %12 = vsyncpa %s11, 0
    loop: start=0, step=1, limit=4
    $region2: #{tpu_custom_call.1} parent=1 // loop_pre_header
      _
    $region3: #{tpu_custom_call.1} parent=1 // loop_header
      %s14 = sphi 0, %s18
      %p15 = scmp.ge.s32.totalorder %s14, 4
      %s22 = sphi 0, %s22
      %s24 = sphi 0, %s22
      %s25 = sphi 0, %s24
      %s39 = sphi 0, %s25
      %s45 = sphi 0, %s47
      %s48 = sphi 0, %s45
      %s49 = sphi 0, %s48
      %s65 = sphi 0, %s49
      %s69 = sphi 0, %s69
      %s71 = sphi 0, %s69
      %s72 = sphi 0, %s71
      %s86 = sphi 0, %s72
      %s90 = sphi 0, %s90
      %s92 = sphi 0, %s90
      %s93 = sphi 0, %s92
      %s107 = sphi 0, %s93
      %s113 = sphi 0, %s115
      %s116 = sphi 0, %s113
      %s117 = sphi 0, %s116
      %s133 = sphi 0, %s117
    $region4: #{tpu_custom_call.1} parent=1 // loop_header_branch
      %17 = sbr.rel (%p15) target = $region8
    $region5: #{tpu_custom_call.1} parent=1 // loop_body
      %s19 = ssub.s32 %s14, 1
      %s20 = ssub.s32 %s14, 2
      %s21 = sadd.s32 %s14, 1
      %s23 = sadd.s32 %s22, 1
      %p26 = scmp.eq.s32.totalorder %s14, 1
      %p27 = scmp.ne.s32.totalorder %s22, %s24
      %p28 = scmp.eq.s32.totalorder %s14, 0
      %p29 = por %p27, %p28
      %p30 = scmp.ne.s32.totalorder %s22, %s24
      %p31 = scmp.eq.s32.totalorder %s19, 1
      %p32 = por %p30, %p31
      %p33 = scmp.ne.s32.totalorder %s24, %s25
      %p34 = scmp.eq.s32.totalorder %s19, 0
      %p35 = por %p33, %p34
      %p36 = scmp.ne.s32.totalorder %s24, %s25
      %p37 = scmp.eq.s32.totalorder %s20, 1
      %p38 = por %p36, %p37
      %p40 = scmp.ne.s32.totalorder %s25, %s39
      %p41 = scmp.eq.s32.totalorder %s20, 0
      %p42 = por %p40, %p41
      %s43 = ssub.s32 %s14, %s21
      %p44 = scmp.eq.s32.totalorder %s43, 0
      %s46 = sadd.s32 %s45, 1
      %s47 = scalar_select %p44, %s45, %s46
      %p50 = pneg %p44
      %p51 = scmp.eq.s32.totalorder %s14, 1
      %p52 = por %p50, %p51
      %p53 = scmp.ne.s32.totalorder %s45, %s48
      %p54 = scmp.eq.s32.totalorder %s14, 0
      %p55 = por %p53, %p54
      %p56 = scmp.ne.s32.totalorder %s45, %s48
      %p57 = scmp.eq.s32.totalorder %s19, 1
      %p58 = por %p56, %p57
      %p59 = scmp.ne.s32.totalorder %s48, %s49
      %p60 = scmp.eq.s32.totalorder %s19, 0
      %p61 = por %p59, %p60
      %p62 = scmp.ne.s32.totalorder %s48, %s49
      %p63 = scmp.eq.s32.totalorder %s20, 1
      %p64 = por %p62, %p63
      %p66 = scmp.ne.s32.totalorder %s49, %s65
      %p67 = scmp.eq.s32.totalorder %s20, 0
      %p68 = por %p66, %p67
      %s70 = sadd.s32 %s69, 1
      %p73 = scmp.eq.s32.totalorder %s14, 1
      %p74 = scmp.ne.s32.totalorder %s69, %s71
      %p75 = scmp.eq.s32.totalorder %s14, 0
      %p76 = por %p74, %p75
      %p77 = scmp.ne.s32.totalorder %s69, %s71
      %p78 = scmp.eq.s32.totalorder %s19, 1
      %p79 = por %p77, %p78
      %p80 = scmp.ne.s32.totalorder %s71, %s72
      %p81 = scmp.eq.s32.totalorder %s19, 0
      %p82 = por %p80, %p81
      %p83 = scmp.ne.s32.totalorder %s71, %s72
      %p84 = scmp.eq.s32.totalorder %s20, 1
      %p85 = por %p83, %p84
      %p87 = scmp.ne.s32.totalorder %s72, %s86
      %p88 = scmp.eq.s32.totalorder %s20, 0
      %p89 = por %p87, %p88
      %s91 = sadd.s32 %s90, 1
      %p94 = scmp.eq.s32.totalorder %s14, 1
      %p95 = scmp.ne.s32.totalorder %s90, %s92
      %p96 = scmp.eq.s32.totalorder %s14, 0
      %p97 = por %p95, %p96
      %p98 = scmp.ne.s32.totalorder %s90, %s92
      %p99 = scmp.eq.s32.totalorder %s19, 1
      %p100 = por %p98, %p99
      %p101 = scmp.ne.s32.totalorder %s92, %s93
      %p102 = scmp.eq.s32.totalorder %s19, 0
      %p103 = por %p101, %p102
      %p104 = scmp.ne.s32.totalorder %s92, %s93
      %p105 = scmp.eq.s32.totalorder %s20, 1
      %p106 = por %p104, %p105
      %p108 = scmp.ne.s32.totalorder %s93, %s107
      %p109 = scmp.eq.s32.totalorder %s20, 0
      %p110 = por %p108, %p109
      %s111 = ssub.s32 %s14, %s21
      %p112 = scmp.eq.s32.totalorder %s111, 0
      %s114 = sadd.s32 %s113, 1
      %s115 = scalar_select %p112, %s113, %s114
      %p118 = pneg %p112
      %p119 = scmp.eq.s32.totalorder %s14, 1
      %p120 = por %p118, %p119
      %p121 = scmp.ne.s32.totalorder %s113, %s116
      %p122 = scmp.eq.s32.totalorder %s14, 0
      %p123 = por %p121, %p122
      %p124 = scmp.ne.s32.totalorder %s113, %s116
      %p125 = scmp.eq.s32.totalorder %s19, 1
      %p126 = por %p124, %p125
      %p127 = scmp.ne.s32.totalorder %s116, %s117
      %p128 = scmp.eq.s32.totalorder %s19, 0
      %p129 = por %p127, %p128
      %p130 = scmp.ne.s32.totalorder %s116, %s117
      %p131 = scmp.eq.s32.totalorder %s20, 1
      %p132 = por %p130, %p131
      %p134 = scmp.ne.s32.totalorder %s117, %s133
      %p135 = scmp.eq.s32.totalorder %s20, 0
      %p136 = por %p134, %p135
      %p137 = scmp.le.s32.totalorder 1, %s14
      %p138 = scmp.lt.s32.totalorder %s14, 3
      %p139 = pnand %p137, %p138
      %p140 = pneg %p139
      // Predicated region
      $region9: #{tpu_custom_call.1} parent=5 // pred_check
        _
      $region10: #{tpu_custom_call.1} parent=5 // pred_check_branch
        %142 = sbr.rel (%p139) target = $region12
      $region11: #{tpu_custom_call.1} parent=5 // pred_region
        %s143 = ssub.s32 %s14, 1
        // Predicated region
        $region13: #{tpu_custom_call.1} parent=11 // pred_check
          %p144 = pneg %p35
        $region14: #{tpu_custom_call.1} parent=11 // pred_check_branch
          %146 = sbr.rel (%p144) target = $region16
        $region15: #{tpu_custom_call.1} parent=11 // pred_region
          _
        $region16: #{tpu_custom_call.1} parent=11 // pred_fallthru
          _
        // Predicated region
        $region17: #{tpu_custom_call.1} parent=11 // pred_check
          %p147 = pneg %p82
        $region18: #{tpu_custom_call.1} parent=11 // pred_check_branch
          %149 = sbr.rel (%p147) target = $region20
        $region19: #{tpu_custom_call.1} parent=11 // pred_region
          _
        $region20: #{tpu_custom_call.1} parent=11 // pred_fallthru
          _
        // Predicated region
        $region21: #{tpu_custom_call.1} parent=11 // pred_check
          %p150 = pneg %p103
        $region22: #{tpu_custom_call.1} parent=11 // pred_check_branch
          %152 = sbr.rel (%p150) target = $region24
        $region23: #{tpu_custom_call.1} parent=11 // pred_region
          _
        $region24: #{tpu_custom_call.1} parent=11 // pred_fallthru
          _
      $region12: #{tpu_custom_call.1} parent=5 // pred_fallthru
        _
      %p153 = scmp.lt.s32.totalorder %s14, 2
      // Predicated region
      $region25: #{tpu_custom_call.1} parent=5 // pred_check
        %p154 = pneg %p153
      $region26: #{tpu_custom_call.1} parent=5 // pred_check_branch
        %156 = sbr.rel (%p154) target = $region28
      $region27: #{tpu_custom_call.1} parent=5 // pred_region
        // Predicated region
        $region29: #{tpu_custom_call.1} parent=27 // pred_check
          %p157 = pneg %p55
        $region30: #{tpu_custom_call.1} parent=27 // pred_check_branch
          %159 = sbr.rel (%p157) target = $region32
        $region31: #{tpu_custom_call.1} parent=27 // pred_region
          %p160 = scmp.lt.s32.totalorder %s14, 1
          %s161 = scalar_select %p160, %s14, 1
          %s162 = smul.addr %s161, 4
          %s163 = scalar_lea.vmem %s1, %s162
        $region32: #{tpu_custom_call.1} parent=27 // pred_fallthru
          _
      $region28: #{tpu_custom_call.1} parent=5 // pred_fallthru
        _
      %p164 = scmp.le.s32.totalorder 1, %s14
      %p165 = scmp.lt.s32.totalorder %s14, 3
      %p166 = pnand %p164, %p165
      %p167 = pneg %p166
      // Predicated region
      $region33: #{tpu_custom_call.1} parent=5 // pred_check
        _
      $region34: #{tpu_custom_call.1} parent=5 // pred_check_branch
        %169 = sbr.rel (%p166) target = $region36
      $region35: #{tpu_custom_call.1} parent=5 // pred_region
        %s170 = ssub.s32 %s14, 1
        %p171 = pneg %p35
        %p172 = pneg %p32
        %p173 = scmp.lt.s32.totalorder %s19, 1
        %s174 = scalar_select %p173, %s19, 1
        %s175 = smul.addr %s174, 4
        %s176 = scalar_lea.vmem %s1, %s175
        %p177 = pneg %p61
        %p178 = pneg %p58
        %p179 = pneg %p82
        %p180 = pneg %p79
        %p181 = pneg %p103
        %p182 = pneg %p100
        %p183 = pneg %p129
        %p184 = pneg %p126
        %s185 = sand.u32 %s116, 1
        %s186 = scalar_lea.sflag [#allocation4], %s185
        %s187 = sand.u32 %s116, 1
        %s188 = smul.addr %s187, 8
        %s189 = scalar_lea.vmem [#allocation3], %s188
        %p190 = scmp.lt.s32.totalorder %s19, 1
        %s191 = scalar_select %p190, %s19, 1
        %s192 = smul.addr %s191, 4
        %s193 = scalar_lea.vmem %s1, %s192
        %s195 = sld [smem:[#allocation2]]
        %v196 = vld [vmem:[%s193] sm:$0xf]
        %v197 = vpack.c.bf16 %v196, %v196
        %v198 = vld [vmem:[%s2] sm:$0xff]
        %v199 = vpack.c.bf16 %v198, %v198
        %v200 = vld [vmem:[%s3] sm:$0xff]
        %202 = vset.pattern.permute.xlu0 0
        %203 = vperm.xlu0 %202, %v200
        %v204 = vpop.permute.xlu0 %203
        %vm206 = vcmask 31744
        %v208 = vsel %vm206, %v199, 0
        %vm210 = vcmask 1041408
        %v212 = vsel %vm210, %v197, 0
        %214 = vmatprep.subr.bf16.mxu0 0
        %215 = vmatpush1.bf16.msra.mxu0 0
        %216 = vmatprep.subr.bf16.mxu0 0
        %217 = vmatpush1.bf16.msra.mxu0 0
        %218 = vmatprep.subr.bf16.mxu0 0
        %219 = vmatpush1.bf16.msra.mxu0 0
        %220 = vmatprep.subr.bf16.mxu0 0
        %221 = vmatpush1.bf16.msra.mxu0 0
        %222 = vmatprep.subr.bf16.mxu0 0
        %223 = vmatpush1.bf16.msra.mxu0 0
        %224 = vmatprep.subr.bf16.mxu0 0
        %225 = vmatpush1.bf16.msra.mxu0 0
        %226 = vmatprep.subr.bf16.mxu0 0
        %227 = vmatpush1.bf16.msra.mxu0 0
        %228 = vmatprep.subr.bf16.mxu0 0
        %229 = vmatpush1.bf16.msra.mxu0 %v212
        %230 = vmatprep.subr.bf16.mxu0 0
        %231 = vmatpush2.bf16.msra.mxu0 0
        %232 = vmatprep.subr.bf16.mxu0 0
        %233 = vmatpush2.bf16.msra.mxu0 0
        %234 = vmatprep.subr.bf16.mxu0 0
        %235 = vmatpush2.bf16.msra.mxu0 0
        %236 = vmatprep.subr.bf16.mxu0 0
        %237 = vmatpush2.bf16.msra.mxu0 0
        %238 = vmatprep.subr.bf16.mxu0 0
        %239 = vmatpush2.bf16.msra.mxu0 0
        %240 = vmatprep.subr.bf16.mxu0 0
        %241 = vmatpush2.bf16.msra.mxu0 0
        %242 = vmatprep.subr.bf16.mxu0 0
        %243 = vmatpush2.bf16.msra.mxu0 0
        %244 = vmatprep.subr.bf16.mxu0 0
        %245 = vmatpush2.bf16.msra.mxu0 0
        %246 = vmatprep.mubr.bf16.mxu0 0
        %247 = vmatmul.mubr.bf16.gmra.mxu0 %v208
        %v248 = vpop.f32.mrf.mxu0
        %v249 = vadd.f32 %v204, %v248
        %v250 = vpop.f32.mrf.mxu0
        %v251 = vpop.f32.mrf.mxu0
        %v252 = vpop.f32.mrf.mxu0
        %253 = vdwg.mxu0
        %v254 = vmul.f32 %v249, 1.442695
        %v255 = vpow.pop %v254
        %v256 = vmul.f32 %v255, 0.5
        %v257 = vxor.u32 %v249, 2147483648
        %v258 = vmul.f32 %v257, 1.442695
        %v259 = vpow.pop %v258
        %v260 = vadd.f32 %v259, 1.0
        %v261 = vrcp.pop %v260
        %v262 = vmul.f32 1.0, %v261
        %vm263 = vcmask 1047557
        %v264 = vsel %vm263, %v262, -inf
        %v265 = vrot.slane %v264, 4
        %v266 = vmax.f32 %v264, %v265
        %v267 = vrot.slane %v266, 2
        %v268 = vmax.f32 %v266, %v267
        %v269 = vrot.slane %v268, 1
        %v270 = vmax.f32 %v268, %v269
        %v271 = vmul.f32 %v262, %v270
        %v272 = vstv %s195
        %vm273 = vcmp.ge.f32.partialorder %v271, %v272
        %v274 = vsel %vm273, 1, 0
        %v275 = vcvt.s32.f32 %v274
        %v277 = vrot.slane %v256, 2
        %v279 = vsub.f32 %v249, %v277
        %280 = vst [vmem:[%s189] sm:$0x3] %v279
        %v281 = vadd.f32 %v249, %v277
        %282 = vst [vmem:[%s189 + $0x2] sm:$0x3] %v281
        %283 = vst [vmem:[%s189] sm:$0x10] %v271
        %284 = vst [vmem:[%s189 + $0x1] sm:$0x10] %v275
        %s285 = sand.u32 %s116, 1
        %s286 = scalar_lea.sflag [#allocation4], %s285
        %s287 = sand.u32 %s116, 1
        %s288 = smul.addr %s287, 8
        %s289 = scalar_lea.vmem [#allocation3], %s288
        // Predicated region
        $region37: #{tpu_custom_call.1} parent=35 // pred_check
          %p290 = pneg %p126
        $region38: #{tpu_custom_call.1} parent=35 // pred_check_branch
          %292 = sbr.rel (%p290) target = $region40
        $region39: #{tpu_custom_call.1} parent=35 // pred_region
          %s294 = ssub.s32 128, 128
          %295 = vsyncadd %s286, %s294
          %s296 = smul.addr %s19, 128
          %s297 = scalar_lea.hbm %s4, %s296
          %s299 = sshll.u32 %s289, 4
          %s300 = int_to_ptr.vmem [resolvable:$true] %s299
          %302 = dma.vmem_to_hbm [thread:$0]  %s300, 128, %s297, %s286
        $region40: #{tpu_custom_call.1} parent=35 // pred_fallthru
          _
      $region36: #{tpu_custom_call.1} parent=5 // pred_fallthru
        _
      %p303 = scmp.le.s32.totalorder 2, %s14
      // Predicated region
      $region41: #{tpu_custom_call.1} parent=5 // pred_check
        %p304 = pneg %p303
      $region42: #{tpu_custom_call.1} parent=5 // pred_check_branch
        %306 = sbr.rel (%p304) target = $region44
      $region43: #{tpu_custom_call.1} parent=5 // pred_region
        %s307 = ssub.s32 %s14, 2
        // Predicated region
        $region45: #{tpu_custom_call.1} parent=43 // pred_check
          %p308 = pneg %p132
        $region46: #{tpu_custom_call.1} parent=43 // pred_check_branch
          %310 = sbr.rel (%p308) target = $region48
        $region47: #{tpu_custom_call.1} parent=43 // pred_region
          %s311 = sand.u32 %s117, 1
          %s312 = scalar_lea.sflag [#allocation4], %s311
          %s313 = sand.u32 %s117, 1
          %s314 = smul.addr %s313, 8
          %s315 = scalar_lea.vmem [#allocation3], %s314
          %316 = dma.done %s312, 128
        $region48: #{tpu_custom_call.1} parent=43 // pred_fallthru
          _
      $region44: #{tpu_custom_call.1} parent=5 // pred_fallthru
        _
    $region6: #{tpu_custom_call.1} parent=1 // loop_footer
      %s18 = sadd.s32 1, %s14
    $region7: #{tpu_custom_call.1} parent=1 // loop_footer_branch
      %13 = sbr.rel target = $region3
    $region8: #{tpu_custom_call.1} parent=1 // loop_exit
      _
    %317 = vsyncpa [#allocation4], 1
    %s318 = scalar_lea.sflag [#allocation4], 1
    %319 = vsyncpa %s318, 1

</llo_original>
